<compile_context>
chip_gen: v6e
topology: v6e:2x2x1
jax: 0.10.0
libtpu: 0.0.40
codegen_flags: <defaults>
</compile_context>

<pallas_src>
import functools
import math

import jax
import jax.numpy as jnp
from jax.experimental import pallas as pl
from jax.experimental.pallas import tpu as pltpu

EPS = 1e-06
LANES = 128
SUBLANES = 8
_TARGET_BLOCK_BYTES = 4 << 20   # per-input, per-step block size in native dtype


def _round_up(a, b):
    return (a + b - 1) // b * b


def _default_num_splits():
    # Two TensorCores share the "parallel" grid axis on megacore-style parts
    # (v7x / v4 / v5p). On single-TC v5e/v6e a 2-way split is pure overhead.
    try:
        kind = jax.devices()[0].device_kind.lower()
    except Exception:
        return 1
    if "v7" in kind or "v4" in kind or "v5p" in kind:
        return 2
    return 1


def _charbonnier_kernel(x_ref, y_ref, out_ref, *, rows, bt, inner_blocks,
                        total_blocks, acc_rows, has_dup, has_ragged):
    c = pl.program_id(0)   # "parallel" split axis (per-core partials)
    i = pl.program_id(1)   # "arbitrary" streaming/reduction axis

    # Zero this split's resident partial-sum block at the start of its sweep.
    @pl.when(i == 0)
    def _():
        out_ref[...] = jnp.zeros_like(out_ref)

    # Cast on load (inputs may be bf16); compute in f32 on the VPU/EUP.
    diff = x_ref[...].astype(jnp.float32) - y_ref[...].astype(jnp.float32)
    err = jnp.sqrt(diff * diff + jnp.float32(EPS))

    def accumulate(vals):
        # (acc_rows, 128) partial sums: independent VPU add chains per step.
        out_ref[...] += vals.reshape(-1, acc_rows, LANES).sum(axis=0)

    if not (has_dup or has_ragged):
        # Hot path: every block fully valid -> no masks, no branches.
        accumulate(err)
    else:
        block = c * inner_blocks + i
        if has_ragged:
            # Interior blocks are fully valid -> unmasked accumulate.
            @pl.when(block < total_blocks - 1)
            def _():
                accumulate(err)

            # Only the final logical block can contain a row overhang; mask it
            # there with a per-block bound (static Python int, so no int32
            # global-index overflow even for multi-billion-element tensors).
            # Duplicated blocks from a ragged core split (block >= total)
            # match neither branch and contribute nothing.
            @pl.when(block == total_blocks - 1)
            def _():
                valid_rows = rows - (total_blocks - 1) * bt
                row = jax.lax.broadcasted_iota(jnp.int32, (bt, 1), 0)
                accumulate(jnp.where(row < valid_rows, err, jnp.float32(0.0)))
        else:
            # Only duplicated trailing blocks (ragged core split) need skipping.
            @pl.when(block < total_blocks)
            def _():
                accumulate(err)


def charbonnier_loss(x, y, *, tile_rows=None, num_splits=None):
    assert x.shape == y.shape, "x and y must have the same shape"
    n = math.prod(x.shape)
    assert n > 0

    itemsize = jnp.dtype(x.dtype).itemsize
    if tile_rows is None:
        # ~4 MiB per input per step in the native dtype (8192 rows for f32,
        # 16384 for bf16), so per-step VALU/overhead amortizes against HBM.
        tile_rows = max(SUBLANES, _TARGET_BLOCK_BYTES // (LANES * itemsize))
    if num_splits is None:
        num_splits = _default_num_splits()

    # Lane-dense (rows, 128) view of the leading n_main elements; the <128
    # element tail (rare path) is summed with a tiny jnp expression instead of
    # paying a full-tensor concatenate/pad copy in HBM.
    rem = n % LANES
    n_main = n - rem
    xf = x.reshape(-1)
    yf = y.reshape(-1)
    if rem:
        d_tail = xf[n_main:].astype(jnp.float32) - yf[n_main:].astype(jnp.float32)
        tail_sum = jnp.sum(jnp.sqrt(d_tail * d_tail + jnp.float32(EPS)))
    else:
        tail_sum = jnp.float32(0.0)

    if n_main == 0:
        return tail_sum / jnp.float32(n)

    rows = n_main // LANES
    if rem:
        xm = xf[:n_main].reshape(rows, LANES)
        ym = yf[:n_main].reshape(rows, LANES)
    else:
        xm = x.reshape(rows, LANES)
        ym = y.reshape(rows, LANES)

    # Streaming block: as large as requested (multiple of 8), clamped to data.
    bt = min(_round_up(tile_rows, SUBLANES), _round_up(rows, SUBLANES))
    total_blocks = pl.cdiv(rows, bt)

    # Split the streaming axis across TensorCores (megacore / v7x only).
    nsplit = max(1, min(num_splits, total_blocks))
    inner_blocks = pl.cdiv(total_blocks, nsplit)
    has_dup = nsplit * inner_blocks != total_blocks
    has_ragged = rows % bt != 0

    # Wider resident accumulator breaks the per-step serial add chain into
    # independent vregs; must evenly divide the block row count.
    acc_rows = 64 if bt % 64 == 0 else SUBLANES

    if has_dup:
        def in_index_map(c, i):
            # Clamp duplicated trailing blocks onto the last real block; their
            # contribution is skipped in-kernel.
            return (jnp.minimum(c * inner_blocks + i, total_blocks - 1), 0)
    else:
        def in_index_map(c, i):
            return (c * inner_blocks + i, 0)

    kernel = functools.partial(
        _charbonnier_kernel,
        rows=rows, bt=bt, inner_blocks=inner_blocks,
        total_blocks=total_blocks, acc_rows=acc_rows,
        has_dup=has_dup, has_ragged=has_ragged,
    )

    block_bytes = bt * LANES * itemsize
    # 2 inputs x 2 pipeline buffers + f32 intermediates, with headroom; floor
    # at the 32 MiB scoped default, cap below v7x's 64 MiB physical VMEM.
    vmem_limit = int(min(48 << 20, max(32 << 20, 12 * block_bytes)))

    partials = pl.pallas_call(
        kernel,
        out_shape=jax.ShapeDtypeStruct((nsplit * acc_rows, LANES), jnp.float32),
        grid_spec=pltpu.PrefetchScalarGridSpec(
            num_scalar_prefetch=0,
            grid=(nsplit, inner_blocks),
            in_specs=[
                pl.BlockSpec((bt, LANES), in_index_map),
                pl.BlockSpec((bt, LANES), in_index_map),
            ],
            out_specs=pl.BlockSpec((acc_rows, LANES), lambda c, i: (c, 0)),
        ),
        compiler_params=pltpu.CompilerParams(
            dimension_semantics=("parallel", "arbitrary"),
            vmem_limit_bytes=vmem_limit),
    )(xm, ym)

    # Single tiny cross-lane reduce + mean in the wrapper.
    return (jnp.sum(partials) + tail_sum) / jnp.float32(n)


if __name__ == "__main__":
    key = jax.random.PRNGKey(0)
    kx, ky, kx2, ky2, kx3, ky3 = jax.random.split(key, 6)

    # 1) NCHW f32 inputs (as the PyTorch module receives), default path.
    x = jax.random.normal(kx, (2, 4, 16, 16), dtype=jnp.float32)
    y = jax.random.normal(ky, (2, 4, 16, 16), dtype=jnp.float32)
    loss = charbonnier_loss(x, y)
    jax.block_until_ready(loss)
    ref = jnp.mean(jnp.sqrt((x - y) ** 2 + EPS))
    assert jnp.allclose(loss, ref, rtol=1e-5, atol=1e-6), (loss, ref)

    # 2) Multi-block grid + forced 2-way core split, bf16 cast-on-load path.
    x2 = jax.random.normal(kx2, (2, 8, 32, 64), dtype=jnp.bfloat16)
    y2 = jax.random.normal(ky2, (2, 8, 32, 64), dtype=jnp.bfloat16)
    loss2 = charbonnier_loss(x2, y2, tile_rows=64, num_splits=2)
    jax.block_until_ready(loss2)
    x2f, y2f = x2.astype(jnp.float32), y2.astype(jnp.float32)
    ref2 = jnp.mean(jnp.sqrt((x2f - y2f) ** 2 + EPS))
    assert jnp.allclose(loss2, ref2, rtol=1e-3, atol=1e-4), (loss2, ref2)

    # 3) Fully ragged case: lane tail (numel % 128 != 0), ragged last block,
    #    ragged 2-way split -> exercises the masked / skip branches.
    x3 = jax.random.normal(kx3, (3, 5, 7, 11), dtype=jnp.float32)
    y3 = jax.random.normal(ky3, (3, 5, 7, 11), dtype=jnp.float32)
    loss3 = charbonnier_loss(x3, y3, tile_rows=8, num_splits=2)
    jax.block_until_ready(loss3)
    ref3 = jnp.mean(jnp.sqrt((x3 - y3) ** 2 + EPS))
    assert jnp.allclose(loss3, ref3, rtol=1e-5, atol=1e-6), (loss3, ref3)

    print("KERNEL_OK")
</pallas_src>

<mosaic_0001>
module attributes {stable_mosaic.version = 11 : i64} {
  func.func @_charbonnier_kernel(%arg0: i32, %arg1: i32, %arg2: memref<16x128xf32, #tpu.memory_space<vmem>>, %arg3: memref<16x128xf32, #tpu.memory_space<vmem>>, %arg4: memref<8x128xf32, #tpu.memory_space<vmem>>) attributes {dimension_semantics = [#tpu.dimension_semantics<parallel>, #tpu.dimension_semantics<arbitrary>], iteration_bounds = array<i64: 1, 1>, scalar_prefetch = 0 : i64, scratch_operands = 0 : i64, tpu.core_type = #tpu.core_type<tc>, window_params = [{transform_indices = @transform_0, window_bounds = array<i64: 16, 128>}, {transform_indices = @transform_1, window_bounds = array<i64: 16, 128>}, {transform_indices = @transform_2, window_bounds = array<i64: 8, 128>}]} {
    %c0_i32 = arith.constant 0 : i32
    %0 = arith.cmpi eq, %arg1, %c0_i32 : i32
    %1 = arith.extui %0 : i1 to i32
    %c0_i32_0 = arith.constant 0 : i32
    %2 = arith.cmpi ne, %1, %c0_i32_0 : i32
    scf.if %2 {
      %cst_9 = arith.constant 0.000000e+00 : f32
      %15 = vector.broadcast %cst_9 : f32 to vector<8x128xf32>
      %c0_10 = arith.constant 0 : index
      %c0_11 = arith.constant 0 : index
      %16 = vector.load %arg4[%c0_10, %c0_11] : memref<8x128xf32, #tpu.memory_space<vmem>>, vector<8x128xf32>
      tpu.vector_store %arg4[%c0_10, %c0_11], %15 {strides = array<i32>} : memref<8x128xf32, #tpu.memory_space<vmem>>, vector<8x128xf32>,
    } else {
    }
    %c0 = arith.constant 0 : index
    %c0_1 = arith.constant 0 : index
    %3 = vector.load %arg2[%c0, %c0_1] : memref<16x128xf32, #tpu.memory_space<vmem>>, vector<16x128xf32>
    %c0_2 = arith.constant 0 : index
    %c0_3 = arith.constant 0 : index
    %4 = vector.load %arg3[%c0_2, %c0_3] : memref<16x128xf32, #tpu.memory_space<vmem>>, vector<16x128xf32>
    %5 = arith.subf %3, %4 : vector<16x128xf32>
    %6 = arith.mulf %5, %5 : vector<16x128xf32>
    %cst = arith.constant 9.99999997E-7 : f32
    %7 = vector.broadcast %cst : f32 to vector<16x128xf32>
    %8 = arith.addf %6, %7 : vector<16x128xf32>
    %9 = math.sqrt %8 : vector<16x128xf32>
    %c0_4 = arith.constant 0 : index
    %c0_5 = arith.constant 0 : index
    %10 = vector.load %arg4[%c0_4, %c0_5] : memref<8x128xf32, #tpu.memory_space<vmem>>, vector<8x128xf32>
    %11 = vector.shape_cast %9 : vector<16x128xf32> to vector<2x8x128xf32>
    %cst_6 = arith.constant dense<0.000000e+00> : vector<8x128xf32>
    %12 = vector.multi_reduction <add>, %11, %cst_6 [0] : vector<2x8x128xf32> to vector<8x128xf32>
    %13 = arith.addf %10, %12 : vector<8x128xf32>
    %c0_7 = arith.constant 0 : index
    %c0_8 = arith.constant 0 : index
    %14 = vector.load %arg4[%c0_7, %c0_8] : memref<8x128xf32, #tpu.memory_space<vmem>>, vector<8x128xf32>
    tpu.vector_store %arg4[%c0_7, %c0_8], %13 {strides = array<i32>} : memref<8x128xf32, #tpu.memory_space<vmem>>, vector<8x128xf32>,
    return
  }
  func.func @transform_0(%arg0: i32, %arg1: i32) -> (i32, i32) {
    %c1_i32 = arith.constant 1 : i32
    %0 = arith.muli %arg0, %c1_i32 : i32
    %1 = arith.addi %0, %arg1 : i32
    %c0_i32 = arith.constant 0 : i32
    %c0_i32_0 = arith.constant 0 : i32
    return %1, %c0_i32 : i32, i32
  }
  func.func @transform_1(%arg0: i32, %arg1: i32) -> (i32, i32) {
    %c1_i32 = arith.constant 1 : i32
    %0 = arith.muli %arg0, %c1_i32 : i32
    %1 = arith.addi %0, %arg1 : i32
    %c0_i32 = arith.constant 0 : i32
    %c0_i32_0 = arith.constant 0 : i32
    return %1, %c0_i32 : i32, i32
  }
  func.func @transform_2(%arg0: i32, %arg1: i32) -> (i32, i32) {
    %c0_i32 = arith.constant 0 : i32
    %c0_i32_0 = arith.constant 0 : i32
    return %arg0, %c0_i32 : i32, i32
  }
}

</mosaic_0001>

<llo_original>
// kernel: tpu_custom_call.1
$region0: #{tpu_custom_call.1}
  #allocation0 [shape = 'u32[]', space=smem, size = 0x4, offset = 0x4, fixed_abs, tag = 'smem constant byte address 0x4 - core index']
  #allocation1 [shape = 'u32[144,128]{1,0:T(1,128)}', space=vmem, size = 0x12000, scoped, tag = 'internal scratch']
  %s0 = inlined_call_operand.hbm [shape: f32[16,128], index: 0, kind: input, shape index: {}]
  %s1 = inlined_call_operand.hbm [shape: f32[16,128], index: 1, kind: input, shape index: {}]
  %s2 = inlined_call_operand.hbm [shape: f32[8,128], index: 2, kind: output, shape index: {}]
  %s3 = sld [smem:[#allocation0]]
  $region30: #{tpu_custom_call.1} parent=0
    _
  %s5 = ssub.s32 1, %s3
  %s6 = scalar_select 0, %s5, %s3
  $region1: #{tpu_custom_call.1} parent=0
    #allocation2 [shape = 'u8[8192]{0}', space=vmem, size = 0x2000, scoped, tag = 'input window, operand 0, single buffered']
    #allocation3 [shape = 's32[1]{0}', space=sflag, size = 0x4, scoped, tag = 'scoped memory for tpu_custom_call.1']
    #allocation4 [shape = 's32[1]{0}', space=sflag, size = 0x4, scoped, tag = 'scoped memory for tpu_custom_call.1']
    #allocation5 [shape = 'u8[8192]{0}', space=vmem, size = 0x2000, scoped, tag = 'input window, operand 1, single buffered']
    #allocation6 [shape = 's32[1]{0}', space=sflag, size = 0x4, scoped, tag = 'scoped memory for tpu_custom_call.1']
    #allocation7 [shape = 'u8[4096]{0}', space=vmem, size = 0x1000, scoped, tag = 'output window, operand 0, single buffered']
    %7 = vsyncpa [#allocation3], 0
    %8 = vsyncpa [#allocation6], 0
    %9 = vsyncpa [#allocation4], 0
    // Predicated region
    $region2: #{tpu_custom_call.1} parent=1 // pred_check
      _
    $region3: #{tpu_custom_call.1} parent=1 // pred_check_branch
      %11 = sbr.rel (0) target = $region5
    $region4: #{tpu_custom_call.1} parent=1 // pred_region
      %s12 = sadd.s32 0, 0
      %s13 = smul.u32 2, %s12
      %s15 = ssub.s32 256, 256
      %16 = vsyncadd [#allocation3], %s15
      %s17 = smul.addr %s13, 128
      %s18 = scalar_lea.hbm %s0, %s17
      %s19 = sshll.u32 [#allocation2], 4
      %s20 = int_to_ptr.vmem [resolvable:$true] %s19
      %25 = dma.hbm_to_vmem [thread:$0]  %s18, 256, %s20, [#allocation3], 128, 128, 8
    $region5: #{tpu_custom_call.1} parent=1 // pred_fallthru
      _
    // Predicated region
    $region6: #{tpu_custom_call.1} parent=1 // pred_check
      _
    $region7: #{tpu_custom_call.1} parent=1 // pred_check_branch
      %27 = sbr.rel (0) target = $region9
    $region8: #{tpu_custom_call.1} parent=1 // pred_region
      %s28 = sadd.s32 0, 0
      %s29 = smul.u32 2, %s28
      %s31 = ssub.s32 256, 256
      %32 = vsyncadd [#allocation6], %s31
      %s33 = smul.addr %s29, 128
      %s34 = scalar_lea.hbm %s1, %s33
      %s35 = sshll.u32 [#allocation5], 4
      %s36 = int_to_ptr.vmem [resolvable:$true] %s35
      %41 = dma.hbm_to_vmem [thread:$0]  %s34, 256, %s36, [#allocation6], 128, 128, 8
    $region9: #{tpu_custom_call.1} parent=1 // pred_fallthru
      _
    // Predicated region
    $region10: #{tpu_custom_call.1} parent=1 // pred_check
      _
    $region11: #{tpu_custom_call.1} parent=1 // pred_check_branch
      %43 = sbr.rel (0) target = $region13
    $region12: #{tpu_custom_call.1} parent=1 // pred_region
      %44 = dma.done [#allocation3], 256
    $region13: #{tpu_custom_call.1} parent=1 // pred_fallthru
      _
    // Predicated region
    $region14: #{tpu_custom_call.1} parent=1 // pred_check
      _
    $region15: #{tpu_custom_call.1} parent=1 // pred_check_branch
      %46 = sbr.rel (0) target = $region17
    $region16: #{tpu_custom_call.1} parent=1 // pred_region
      %47 = dma.done [#allocation6], 256
    $region17: #{tpu_custom_call.1} parent=1 // pred_fallthru
      _
    %s48 = sadd.s32 0, 0
    %s49 = smul.u32 2, %s48
    %s50 = sadd.s32 0, 0
    %s51 = smul.u32 2, %s50
    %p52 = scmp.eq.s32.totalorder 0, 0
    // Predicated region
    $region18: #{tpu_custom_call.1} parent=1 // pred_check
      %p53 = pneg %p52
    $region19: #{tpu_custom_call.1} parent=1 // pred_check_branch
      %55 = sbr.rel (%p53) target = $region21
    $region20: #{tpu_custom_call.1} parent=1 // pred_region
      %56 = vst [vmem:[#allocation7] sm:$0xff] 0.0
    $region21: #{tpu_custom_call.1} parent=1 // pred_fallthru
      _
    %v57 = vld [vmem:[#allocation2] sm:$0xff]
    %v58 = vld [vmem:[#allocation2 + $0x8] sm:$0xff]
    %v59 = vld [vmem:[#allocation5] sm:$0xff]
    %v60 = vld [vmem:[#allocation5 + $0x8] sm:$0xff]
    %v61 = vsub.f32 %v57, %v59
    %v62 = vsub.f32 %v58, %v60
    %v63 = vmul.f32 %v61, %v61
    %v64 = vmul.f32 %v62, %v62
    %v65 = vadd.f32 %v63, 1e-06
    %v66 = vadd.f32 %v64, 1e-06
    %v67 = vrsqrt.pop %v65
    %v68 = vmul.f32 %v65, %v67
    %vm69 = vcmp.eq.f32.partialorder %v65, inf
    %v70 = vsel %vm69, %v65, %v68
    %vm71 = vcmp.eq.f32.partialorder %v65, 0.0
    %v72 = vand.u32 %v65, 2147483648
    %v73 = vsel %vm71, %v72, %v70
    %v74 = vrsqrt.pop %v66
    %v75 = vmul.f32 %v66, %v74
    %vm76 = vcmp.eq.f32.partialorder %v66, inf
    %v77 = vsel %vm76, %v66, %v75
    %vm78 = vcmp.eq.f32.partialorder %v66, 0.0
    %v79 = vand.u32 %v66, 2147483648
    %v80 = vsel %vm78, %v79, %v77
    %v81 = vld [vmem:[#allocation7] sm:$0xff]
    %v82 = vadd.f32 %v73, %v80
    %v83 = vadd.f32 %v81, %v82
    %84 = vst [vmem:[#allocation7] sm:$0xff] %v83
    // Predicated region
    $region22: #{tpu_custom_call.1} parent=1 // pred_check
      _
    $region23: #{tpu_custom_call.1} parent=1 // pred_check_branch
      %86 = sbr.rel (0) target = $region25
    $region24: #{tpu_custom_call.1} parent=1 // pred_region
      %s88 = ssub.s32 128, 128
      %89 = vsyncadd [#allocation4], %s88
      %s91 = sshll.u32 [#allocation7], 4
      %s92 = int_to_ptr.vmem [resolvable:$true] %s91
      %94 = dma.vmem_to_hbm [thread:$0]  %s92, 128, %s2, [#allocation4]
    $region25: #{tpu_custom_call.1} parent=1 // pred_fallthru
      _
    // Predicated region
    $region26: #{tpu_custom_call.1} parent=1 // pred_check
      _
    $region27: #{tpu_custom_call.1} parent=1 // pred_check_branch
      %96 = sbr.rel (0) target = $region29
    $region28: #{tpu_custom_call.1} parent=1 // pred_region
      %97 = dma.done [#allocation4], 128
    $region29: #{tpu_custom_call.1} parent=1 // pred_fallthru
      _
    %98 = vsyncpa [#allocation3], 1
    %99 = vsyncpa [#allocation6], 1
    %100 = vsyncpa [#allocation4], 1

</llo_original>
